<compile_context>
chip_gen: v5e
topology: v5e:2x2
jax: 0.10.0
libtpu: 0.0.40
codegen_flags: <defaults>
</compile_context>

<pallas_src>
import functools

import jax
import jax.numpy as jnp
from jax.experimental import pallas as pl
from jax.experimental.pallas import tpu as pltpu


def _ce_kernel(pred_ref, soft_ref, out_ref, *, inv_T, total_rows, tile_rows):
    i = pl.program_id(0)

    p = pred_ref[...].astype(jnp.float32) * inv_T
    s = soft_ref[...].astype(jnp.float32) * inv_T

    # Unnormalized softmax(soft_label / T) along the class (lane) axis.
    s_max = jnp.max(s, axis=-1, keepdims=True)
    s_exp = jnp.exp(s - s_max)
    s_den = jnp.sum(s_exp, axis=-1, keepdims=True)            # (tile_rows, 1)

    # log_softmax(pred / T) pieces.
    p_max = jnp.max(p, axis=-1, keepdims=True)
    p_shift = p - p_max
    lse = jnp.log(jnp.sum(jnp.exp(p_shift), axis=-1, keepdims=True))  # (tile_rows, 1)

    # -sum(softmax(s) * (p_shift - lse)) = lse - sum(s_exp * p_shift) / sum(s_exp)
    dot = jnp.sum(s_exp * p_shift, axis=-1, keepdims=True)    # (tile_rows, 1)
    row_loss = lse - dot * pl.reciprocal(s_den, approx=False)  # (tile_rows, 1)

    # Mask rows that come from padding (global row index >= total_rows).
    row_ids = jax.lax.broadcasted_iota(jnp.int32, (tile_rows, 1), 0) + i * tile_rows
    row_loss = jnp.where(row_ids < total_rows, row_loss, 0.0)

    partial = jnp.sum(row_loss)
    out_ref[...] = jnp.full((1, 128), partial, dtype=jnp.float32)


def _round_up(x, m):
    return (x + m - 1) // m * m


def category_cross_entropy(pred, soft_label, T, *,
                           max_tile_rows=2048, max_block_bytes=4 * 1024 * 1024):
    """pred, soft_label: (B, N, C). Returns scalar float32 loss."""
    B, N, C = pred.shape
    R = B * N

    itemsize = max(jnp.dtype(pred.dtype).itemsize, jnp.dtype(soft_label.dtype).itemsize)
    # Sublane alignment: 8 rows for f32, 16 for bf16/f16, 32 for 8-bit dtypes.
    row_align = max(8, 32 // itemsize)

    # Biggest row tile that keeps one input block <= max_block_bytes, capped, aligned,
    # and never larger than the (padded) row count.
    rows_by_bytes = max(row_align,
                        (max_block_bytes // (C * itemsize)) // row_align * row_align)
    tile_rows = min(max_tile_rows, rows_by_bytes)
    tile_rows = min(tile_rows, _round_up(R, row_align))
    tile_rows = max(row_align, (tile_rows // row_align) * row_align)

    num_tiles = pl.cdiv(R, tile_rows)
    R_pad = num_tiles * tile_rows

    pred2d = pred.reshape(R, C)
    soft2d = soft_label.reshape(R, C)
    if R_pad != R:
        pad = R_pad - R
        pred2d = jnp.pad(pred2d, ((0, pad), (0, 0)))
        soft2d = jnp.pad(soft2d, ((0, pad), (0, 0)))

    # VMEM budget: 2 inputs x 2 pipeline buffers x block, plus headroom.
    block_bytes = tile_rows * C * itemsize
    vmem_limit = int(min(96 << 20, max(16 << 20, 4 * block_bytes + (4 << 20))))

    kernel = functools.partial(_ce_kernel, inv_T=1.0 / float(T),
                               total_rows=R, tile_rows=tile_rows)

    partials = pl.pallas_call(
        kernel,
        out_shape=jax.ShapeDtypeStruct((num_tiles, 128), jnp.float32),
        grid_spec=pltpu.PrefetchScalarGridSpec(
            num_scalar_prefetch=0,
            grid=(num_tiles,),
            in_specs=[
                pl.BlockSpec((tile_rows, C), lambda i: (i, 0)),
                pl.BlockSpec((tile_rows, C), lambda i: (i, 0)),
            ],
            out_specs=pl.BlockSpec((1, 128), lambda i: (i, 0)),
        ),
        compiler_params=pltpu.CompilerParams(
            dimension_semantics=("parallel",),
            vmem_limit_bytes=vmem_limit,
        ),
    )(pred2d, soft2d)

    # mean(-1).mean(-1) over a uniform (B, N) grid == sum / (B * N)
    return jnp.sum(partials[:, 0]) / R


def _reference(pred, soft_label, T):
    soft = jax.nn.softmax(soft_label.astype(jnp.float32) / T, axis=-1)
    loss = -jnp.sum(soft * jax.nn.log_softmax(pred.astype(jnp.float32) / T, axis=-1), axis=-1)
    return jnp.mean(jnp.mean(loss, axis=-1), axis=-1)


if __name__ == "__main__":
    key = jax.random.PRNGKey(0)
    k1, k2, k3, k4 = jax.random.split(key, 4)

    T = 4.0

    # Primary small case consistent with the module: (batch, tokens, classes).
    B, N, C = 2, 8, 128
    pred = jax.random.normal(k1, (B, N, C), dtype=jnp.float32)
    soft_label = jax.random.normal(k2, (B, N, C), dtype=jnp.float32)

    loss = category_cross_entropy(pred, soft_label, T)
    loss = jax.block_until_ready(loss)
    ref = _reference(pred, soft_label, T)
    assert jnp.allclose(loss, ref, rtol=1e-5, atol=1e-5), (loss, ref)

    # Ragged row count (exercises row padding + masking) with bf16 inputs.
    B2, N2, C2 = 3, 5, 256
    pred2 = jax.random.normal(k3, (B2, N2, C2), dtype=jnp.bfloat16)
    soft2 = jax.random.normal(k4, (B2, N2, C2), dtype=jnp.bfloat16)

    loss2 = category_cross_entropy(pred2, soft2, T)
    loss2 = jax.block_until_ready(loss2)
    ref2 = _reference(pred2, soft2, T)
    assert jnp.allclose(loss2, ref2, rtol=1e-4, atol=1e-4), (loss2, ref2)

    print("KERNEL_OK")
</pallas_src>

<mosaic_0001>
module attributes {stable_mosaic.version = 11 : i64} {
  func.func @_ce_kernel(%arg0: i32, %arg1: memref<16x128xf32, #tpu.memory_space<vmem>>, %arg2: memref<16x128xf32, #tpu.memory_space<vmem>>, %arg3: memref<1x128xf32, #tpu.memory_space<vmem>>) attributes {dimension_semantics = [#tpu.dimension_semantics<parallel>], iteration_bounds = array<i64: 1>, scalar_prefetch = 0 : i64, scratch_operands = 0 : i64, tpu.core_type = #tpu.core_type<tc>, window_params = [{transform_indices = @transform_0, window_bounds = array<i64: 16, 128>}, {transform_indices = @transform_1, window_bounds = array<i64: 16, 128>}, {transform_indices = @transform_2, window_bounds = array<i64: 1, 128>}]} {
    %c0 = arith.constant 0 : index
    %c0_0 = arith.constant 0 : index
    %0 = vector.load %arg1[%c0, %c0_0] : memref<16x128xf32, #tpu.memory_space<vmem>>, vector<16x128xf32>
    %cst = arith.constant 2.500000e-01 : f32
    %1 = vector.broadcast %cst : f32 to vector<16x128xf32>
    %2 = arith.mulf %0, %1 : vector<16x128xf32>
    %c0_1 = arith.constant 0 : index
    %c0_2 = arith.constant 0 : index
    %3 = vector.load %arg2[%c0_1, %c0_2] : memref<16x128xf32, #tpu.memory_space<vmem>>, vector<16x128xf32>
    %cst_3 = arith.constant 2.500000e-01 : f32
    %4 = vector.broadcast %cst_3 : f32 to vector<16x128xf32>
    %5 = arith.mulf %3, %4 : vector<16x128xf32>
    %cst_4 = arith.constant dense<0xFF800000> : vector<16xf32>
    %6 = vector.multi_reduction <maximumf>, %5, %cst_4 [1] : vector<16x128xf32> to vector<16xf32>
    %7 = vector.shape_cast %6 : vector<16xf32> to vector<16x1xf32>
    %8 = vector.broadcast %7 : vector<16x1xf32> to vector<16x128xf32>
    %9 = arith.subf %5, %8 : vector<16x128xf32>
    %10 = math.exp %9 : vector<16x128xf32>
    %cst_5 = arith.constant dense<0.000000e+00> : vector<16xf32>
    %11 = vector.multi_reduction <add>, %10, %cst_5 [1] : vector<16x128xf32> to vector<16xf32>
    %12 = vector.shape_cast %11 : vector<16xf32> to vector<16x1xf32>
    %cst_6 = arith.constant dense<0xFF800000> : vector<16xf32>
    %13 = vector.multi_reduction <maximumf>, %2, %cst_6 [1] : vector<16x128xf32> to vector<16xf32>
    %14 = vector.shape_cast %13 : vector<16xf32> to vector<16x1xf32>
    %15 = vector.broadcast %14 : vector<16x1xf32> to vector<16x128xf32>
    %16 = arith.subf %2, %15 : vector<16x128xf32>
    %17 = math.exp %16 : vector<16x128xf32>
    %cst_7 = arith.constant dense<0.000000e+00> : vector<16xf32>
    %18 = vector.multi_reduction <add>, %17, %cst_7 [1] : vector<16x128xf32> to vector<16xf32>
    %19 = vector.shape_cast %18 : vector<16xf32> to vector<16x1xf32>
    %20 = math.log %19 : vector<16x1xf32>
    %21 = arith.mulf %10, %16 : vector<16x128xf32>
    %cst_8 = arith.constant dense<0.000000e+00> : vector<16xf32>
    %22 = vector.multi_reduction <add>, %21, %cst_8 [1] : vector<16x128xf32> to vector<16xf32>
    %23 = vector.shape_cast %22 : vector<16xf32> to vector<16x1xf32>
    %24 = tpu.reciprocal %12 : vector<16x1xf32> -> vector<16x1xf32>
    %25 = arith.mulf %23, %24 : vector<16x1xf32>
    %26 = arith.subf %20, %25 : vector<16x1xf32>
    %27 = tpu.iota {dimensions = array<i32: 0>} : vector<16x1xi32>
    %c16_i32 = arith.constant 16 : i32
    %28 = arith.muli %arg0, %c16_i32 : i32
    %29 = vector.broadcast %28 : i32 to vector<16x1xi32>
    %30 = arith.addi %27, %29 : vector<16x1xi32>
    %c16_i32_9 = arith.constant 16 : i32
    %31 = vector.broadcast %c16_i32_9 : i32 to vector<16x1xi32>
    %32 = arith.cmpi slt, %30, %31 : vector<16x1xi32>
    %cst_10 = arith.constant 0.000000e+00 : f32
    %33 = vector.broadcast %cst_10 : f32 to vector<16x1xf32>
    %34 = arith.select %32, %26, %33 : vector<16x1xi1>, vector<16x1xf32>
    %35 = vector.shape_cast %34 : vector<16x1xf32> to vector<1x16x1xf32>
    %cst_11 = arith.constant dense<0.000000e+00> : vector<1xf32>
    %36 = vector.multi_reduction <add>, %35, %cst_11 [1, 2] : vector<1x16x1xf32> to vector<1xf32>
    %37 = vector.shape_cast %36 : vector<1xf32> to vector<1x1x1xf32>
    %38 = vector.extract %37[0, 0, 0] : f32 from vector<1x1x1xf32>
    %39 = vector.broadcast %38 : f32 to vector<1x128xf32>
    %c0_12 = arith.constant 0 : index
    %c0_13 = arith.constant 0 : index
    %40 = vector.load %arg3[%c0_12, %c0_13] : memref<1x128xf32, #tpu.memory_space<vmem>>, vector<1x128xf32>
    tpu.vector_store %arg3[%c0_12, %c0_13], %39 {strides = array<i32>} : memref<1x128xf32, #tpu.memory_space<vmem>>, vector<1x128xf32>,
    return
  }
  func.func @transform_0(%arg0: i32) -> (i32, i32) {
    %c0_i32 = arith.constant 0 : i32
    %c0_i32_0 = arith.constant 0 : i32
    return %arg0, %c0_i32 : i32, i32
  }
  func.func @transform_1(%arg0: i32) -> (i32, i32) {
    %c0_i32 = arith.constant 0 : i32
    %c0_i32_0 = arith.constant 0 : i32
    return %arg0, %c0_i32 : i32, i32
  }
  func.func @transform_2(%arg0: i32) -> (i32, i32) {
    %c0_i32 = arith.constant 0 : i32
    %c0_i32_0 = arith.constant 0 : i32
    return %arg0, %c0_i32 : i32, i32
  }
}

</mosaic_0001>

<llo_original>
// kernel: tpu_custom_call.1
$region0: #{tpu_custom_call.1}
  #allocation0 [shape = 'u32[]', space=smem, size = 0x4, offset = 0x4, fixed_abs, tag = 'smem constant byte address 0x4 - core index']
  #allocation1 [shape = 'u32[72,128]{1,0:T(1,128)}', space=vmem, size = 0x9000, scoped, tag = 'internal scratch']
  %s0 = inlined_call_operand.hbm [shape: f32[16,128], index: 0, kind: input, shape index: {}]
  %s1 = inlined_call_operand.hbm [shape: f32[16,128], index: 1, kind: input, shape index: {}]
  %s2 = inlined_call_operand.hbm [shape: f32[1,128], index: 2, kind: output, shape index: {}]
  %s3 = sld [smem:[#allocation0]]
  $region26: #{tpu_custom_call.1} parent=0
    _
  %s5 = ssub.s32 1, %s3
  %s6 = scalar_select 0, %s5, %s3
  $region1: #{tpu_custom_call.1} parent=0
    #allocation2 [shape = 'u8[8192]{0}', space=vmem, size = 0x2000, scoped, tag = 'input window, operand 0, single buffered']
    #allocation3 [shape = 's32[1]{0}', space=sflag, size = 0x4, scoped, tag = 'scoped memory for tpu_custom_call.1']
    #allocation4 [shape = 's32[1]{0}', space=sflag, size = 0x4, scoped, tag = 'scoped memory for tpu_custom_call.1']
    #allocation5 [shape = 'u8[8192]{0}', space=vmem, size = 0x2000, scoped, tag = 'input window, operand 1, single buffered']
    #allocation6 [shape = 's32[1]{0}', space=sflag, size = 0x4, scoped, tag = 'scoped memory for tpu_custom_call.1']
    #allocation7 [shape = 'u8[512]{0}', space=vmem, size = 0x400, scoped, tag = 'output window, operand 0, single buffered']
    %7 = vsyncpa [#allocation3], 0
    %8 = vsyncpa [#allocation6], 0
    %9 = vsyncpa [#allocation4], 0
    // Predicated region
    $region2: #{tpu_custom_call.1} parent=1 // pred_check
      _
    $region3: #{tpu_custom_call.1} parent=1 // pred_check_branch
      %11 = sbr.rel (0) target = $region5
    $region4: #{tpu_custom_call.1} parent=1 // pred_region
      %13 = vsyncadd [#allocation3], 0
      %s14 = sshll.u32 %s0, 4
      %s15 = int_to_ptr.hbm [resolvable:$true] %s14
      %s16 = sshll.u32 [#allocation2], 4
      %s17 = int_to_ptr.vmem [resolvable:$true] %s16
      %22 = dma.hbm_to_vmem [thread:$0]  %s15, 256, %s17, [#allocation3], 128, 128, 8
    $region5: #{tpu_custom_call.1} parent=1 // pred_fallthru
      _
    // Predicated region
    $region6: #{tpu_custom_call.1} parent=1 // pred_check
      _
    $region7: #{tpu_custom_call.1} parent=1 // pred_check_branch
      %24 = sbr.rel (0) target = $region9
    $region8: #{tpu_custom_call.1} parent=1 // pred_region
      %26 = vsyncadd [#allocation6], 0
      %s27 = sshll.u32 %s1, 4
      %s28 = int_to_ptr.hbm [resolvable:$true] %s27
      %s29 = sshll.u32 [#allocation5], 4
      %s30 = int_to_ptr.vmem [resolvable:$true] %s29
      %35 = dma.hbm_to_vmem [thread:$0]  %s28, 256, %s30, [#allocation6], 128, 128, 8
    $region9: #{tpu_custom_call.1} parent=1 // pred_fallthru
      _
    // Predicated region
    $region10: #{tpu_custom_call.1} parent=1 // pred_check
      _
    $region11: #{tpu_custom_call.1} parent=1 // pred_check_branch
      %37 = sbr.rel (0) target = $region13
    $region12: #{tpu_custom_call.1} parent=1 // pred_region
      %39 = dma.done [#allocation3], 256
    $region13: #{tpu_custom_call.1} parent=1 // pred_fallthru
      _
    // Predicated region
    $region14: #{tpu_custom_call.1} parent=1 // pred_check
      _
    $region15: #{tpu_custom_call.1} parent=1 // pred_check_branch
      %41 = sbr.rel (0) target = $region17
    $region16: #{tpu_custom_call.1} parent=1 // pred_region
      %43 = dma.done [#allocation6], 256
    $region17: #{tpu_custom_call.1} parent=1 // pred_fallthru
      _
    %v44 = vld [vmem:[#allocation2] sm:$0xff]
    %v45 = vld [vmem:[#allocation2 + $0x8] sm:$0xff]
    %v46 = vmul.f32 %v44, 0.25
    %v47 = vmul.f32 %v45, 0.25
    %v48 = vld [vmem:[#allocation5] sm:$0xff]
    %v49 = vld [vmem:[#allocation5 + $0x8] sm:$0xff]
    %v50 = vmul.f32 %v48, 0.25
    %v51 = vmul.f32 %v49, 0.25
    %52 = vmax.xlane.f32.xlu0 %v50
    %v53 = vpop.xlane.xlu0 %52
    %54 = vmax.xlane.f32.xlu0 %v51
    %v55 = vpop.xlane.xlu0 %54
    %v56 = vsub.f32 %v50, %v53
    %v57 = vsub.f32 %v51, %v55
    %v58 = vmul.f32 %v56, 1.442695
    %v59 = vpow.pop %v58
    %v60 = vmul.f32 %v57, 1.442695
    %v61 = vpow.pop %v60
    %62 = vadd.xlane.f32.xlu0 %v59
    %v63 = vpop.xlane.xlu0 %62
    %64 = vadd.xlane.f32.xlu0 %v61
    %v65 = vpop.xlane.xlu0 %64
    %66 = vmax.xlane.f32.xlu0 %v46
    %v67 = vpop.xlane.xlu0 %66
    %68 = vmax.xlane.f32.xlu0 %v47
    %v69 = vpop.xlane.xlu0 %68
    %v70 = vsub.f32 %v46, %v67
    %v71 = vsub.f32 %v47, %v69
    %v72 = vmul.f32 %v70, 1.442695
    %v73 = vpow.pop %v72
    %v74 = vmul.f32 %v71, 1.442695
    %v75 = vpow.pop %v74
    %76 = vadd.xlane.f32.xlu0 %v73
    %v77 = vpop.xlane.xlu0 %76
    %78 = vadd.xlane.f32.xlu0 %v75
    %v79 = vpop.xlane.xlu0 %78
    %v80 = vlog2.pop %v77
    %v81 = vmul.f32 %v80, 0.6931472
    %v82 = vlog2.pop %v79
    %v83 = vmul.f32 %v82, 0.6931472
    %v84 = vmul.f32 %v59, %v70
    %v85 = vmul.f32 %v61, %v71
    %86 = vadd.xlane.f32.xlu0 %v84
    %v87 = vpop.xlane.xlu0 %86
    %88 = vadd.xlane.f32.xlu0 %v85
    %v89 = vpop.xlane.xlu0 %88
    %v90 = vrcp.pop %v63
    %v91 = vmul.f32 %v63, %v90
    %v92 = vsub.f32 1.0, %v91
    %v93 = vmul.f32 %v90, %v92
    %v94 = vadd.f32 %v90, %v93
    %vm95 = vweird.f32 %v63
    %vm96 = vweird.f32 %v90
    %vm97 = vmor %vm95, %vm96
    %v98 = vsel %vm97, %v90, %v94
    %v99 = vand.u32 2147483647, %v63
    %vm100 = vcmp.eq.f32.partialorder %v99, 8.507059e+37
    %v101 = vand.u32 %v63, 2147483648
    %v102 = vor.u32 1.1754944e-38, %v101
    %v103 = vsel %vm100, %v102, %v98
    %v104 = vrcp.pop %v65
    %v105 = vmul.f32 %v65, %v104
    %v106 = vsub.f32 1.0, %v105
    %v107 = vmul.f32 %v104, %v106
    %v108 = vadd.f32 %v104, %v107
    %vm109 = vweird.f32 %v65
    %vm110 = vweird.f32 %v104
    %vm111 = vmor %vm109, %vm110
    %v112 = vsel %vm111, %v104, %v108
    %v113 = vand.u32 2147483647, %v65
    %vm114 = vcmp.eq.f32.partialorder %v113, 8.507059e+37
    %v115 = vand.u32 %v65, 2147483648
    %v116 = vor.u32 1.1754944e-38, %v115
    %v117 = vsel %vm114, %v116, %v112
    %v118 = vmul.f32 %v87, %v103
    %v119 = vmul.f32 %v89, %v117
    %v120 = vsub.f32 %v81, %v118
    %v121 = vsub.f32 %v83, %v119
    %v122 = vlaneseq
    %v123 = vshrl.u32 %v122, 7
    %v124 = vadd.s32 %v123, 8
    %s125 = smul.u32 0, 16
    %v126 = vstv %s125
    %v127 = vadd.s32 %v123, %v126
    %v128 = vadd.s32 %v124, %v126
    %vm129 = vcmp.lt.s32.totalorder %v127, 16
    %vm130 = vcmp.lt.s32.totalorder %v128, 16
    %v131 = vsel %vm129, %v120, 0.0
    %v132 = vsel %vm130, %v121, 0.0
    %vm133 = vcmask 7168
    %v134 = vsel %vm133, %v131, 0.0
    %v135 = vsel %vm133, %v132, 0.0
    %v136 = vadd.f32 %v134, %v135
    %137 = vadd.xlane.f32.xlu0 %v136
    %v138 = vpop.xlane.xlu0 %137
    %v139 = vrot.slane %v138, 4
    %v140 = vadd.f32 %v138, %v139
    %v141 = vrot.slane %v140, 2
    %v142 = vadd.f32 %v140, %v141
    %v143 = vrot.slane %v142, 1
    %v144 = vadd.f32 %v142, %v143
    %s145 = vtos %v144
    %v146 = vstv %s145
    %147 = vst [vmem:[#allocation7] sm:$0x1] %v146
    // Predicated region
    $region18: #{tpu_custom_call.1} parent=1 // pred_check
      _
    $region19: #{tpu_custom_call.1} parent=1 // pred_check_branch
      %149 = sbr.rel (0) target = $region21
    $region20: #{tpu_custom_call.1} parent=1 // pred_region
      %151 = vsyncadd [#allocation4], 0
      %s153 = sshll.u32 [#allocation7], 4
      %s154 = int_to_ptr.vmem [resolvable:$true] %s153
      %s155 = sshll.u32 %s2, 4
      %s156 = int_to_ptr.hbm [resolvable:$true] %s155
      %158 = dma.vmem_to_hbm [thread:$0]  %s154, 16, %s156, [#allocation4]
    $region21: #{tpu_custom_call.1} parent=1 // pred_fallthru
      _
    // Predicated region
    $region22: #{tpu_custom_call.1} parent=1 // pred_check
      _
    $region23: #{tpu_custom_call.1} parent=1 // pred_check_branch
      %160 = sbr.rel (0) target = $region25
    $region24: #{tpu_custom_call.1} parent=1 // pred_region
      %162 = dma.done [#allocation4], 16
    $region25: #{tpu_custom_call.1} parent=1 // pred_fallthru
      _
    %163 = vsyncpa [#allocation3], 1
    %164 = vsyncpa [#allocation6], 1
    %165 = vsyncpa [#allocation4], 1

</llo_original>
